<compile_context>
chip_gen: v7x
topology: tpu7x:2x2x1
jax: 0.10.0
libtpu: 0.0.40
codegen_flags: <defaults>
</compile_context>

<pallas_src>
import math

import jax
import jax.numpy as jnp
from jax.experimental import pallas as pl
from jax.experimental.pallas import tpu as pltpu


# ---------------------------------------------------------------------------
# Pallas kernel: copy one (tm, W) tile (identity).
# ---------------------------------------------------------------------------
def _identity_copy_kernel(x_ref, o_ref):
    o_ref[...] = x_ref[...]


def _pallas_copy_2d(x2, tile_rows):
    R, W = x2.shape
    nbytes = R * W * x2.dtype.itemsize
    return pl.pallas_call(
        _identity_copy_kernel,
        out_shape=jax.ShapeDtypeStruct((R, W), x2.dtype),
        grid=(pl.cdiv(R, tile_rows),),
        in_specs=[pl.BlockSpec((tile_rows, W), lambda i: (i, 0))],
        out_specs=pl.BlockSpec((tile_rows, W), lambda i: (i, 0)),
        compiler_params=pltpu.CompilerParams(
            dimension_semantics=("parallel",),  # shards rows across 2 TCs on v7x
        ),
        cost_estimate=pl.CostEstimate(
            flops=0, transcendentals=0, bytes_accessed=2 * nbytes
        ),
    )(x2)


def _sublane_multiple(dtype) -> int:
    """Native sublane packing for the dtype (8 for 32-bit, 16 for 16-bit, ...)."""
    itemsize = jnp.dtype(dtype).itemsize
    return max(8, 8 * (4 // max(1, itemsize)))


# ---------------------------------------------------------------------------
# Module wrapper: MMIdentity.forward(x, *args, **kwargs) -> x
# ---------------------------------------------------------------------------
def mm_identity(x, *args, **kwargs):
    """Pallas TPU implementation of MMIdentity: returns x unchanged."""
    del args, kwargs  # extra args are ignored, exactly like the PyTorch module
    orig_shape = x.shape

    if x.ndim == 0:
        # Degenerate scalar: copy via a (1, 1) tile (full-extent block is legal).
        return _pallas_copy_2d(x.reshape(1, 1), 1).reshape(orig_shape)

    total = math.prod(orig_shape)
    if total == 0:
        return x  # nothing to copy

    # --- Pick a lane-dense 2-D view (R, W): W a multiple of 128 if possible ---
    W = None
    for cand in (1024, 512, 256, 128):
        if total % cand == 0:
            W = cand
            break
    if W is None:
        # Fallback: keep the trailing dim as lanes (full-extent block is always
        # legal); stores may be masked but the copy stays correct.
        W = orig_shape[-1]
    R = total // W
    x2 = x.reshape(R, W)  # contiguous reshape -> free layout plumbing, no HBM copy

    # --- Row tile: dtype-aligned sublanes, ~2 MiB per buffer, pipelined ---
    sub = _sublane_multiple(x2.dtype)
    bytes_per_row = W * x2.dtype.itemsize
    target_block_bytes = 1 << 21  # ~2 MiB; 4 double-buffered tiles << 16 MiB (v5e default)
    if R <= sub:
        tile_rows = R  # full extent (always legal, even when < sublane multiple)
    else:
        rows_per_block = max(sub, target_block_bytes // max(1, bytes_per_row))
        tile_rows = min(R, rows_per_block)
        tile_rows -= tile_rows % sub  # sublane-aligned; last grid block may be ragged
        tile_rows = max(tile_rows, sub)

    y2 = _pallas_copy_2d(x2, tile_rows)
    return y2.reshape(orig_shape)


# ---------------------------------------------------------------------------
# Self-test
# ---------------------------------------------------------------------------
if __name__ == "__main__":
    key = jax.random.PRNGKey(0)

    # Small shape consistent with the module's usage (B, N, C) activations.
    B, N, C = 2, 16, 32
    x = jax.random.normal(key, (B, N, C), jnp.float32)

    out = mm_identity(x, "extra_positional_arg", some_kwarg=123)
    out = jax.block_until_ready(out)

    assert out.shape == x.shape
    assert out.dtype == x.dtype
    assert jnp.array_equal(out, x), "identity mismatch"

    # Exercises the bf16 sublane alignment + row tiling + ragged last block.
    x2 = jax.random.normal(jax.random.PRNGKey(0), (3, 40, 128), jnp.bfloat16)
    out2 = jax.block_until_ready(mm_identity(x2))
    assert out2.shape == x2.shape and out2.dtype == x2.dtype
    assert jnp.array_equal(out2, x2), "identity mismatch (tiled bf16 case)"

    # Non-128-divisible trailing dim (fallback path).
    x3 = jax.random.normal(jax.random.PRNGKey(0), (5, 7, 33), jnp.float32)
    out3 = jax.block_until_ready(mm_identity(x3))
    assert jnp.array_equal(out3, x3), "identity mismatch (ragged-lane case)"

    print("KERNEL_OK")
</pallas_src>

<mosaic_0001>
module attributes {stable_mosaic.version = 11 : i64} {
  func.func @_identity_copy_kernel(%arg0: i32, %arg1: memref<1x1024xf32, #tpu.memory_space<vmem>>, %arg2: memref<1x1024xf32, #tpu.memory_space<vmem>>) attributes {dimension_semantics = [#tpu.dimension_semantics<parallel>], iteration_bounds = array<i64: 1>, scalar_prefetch = 0 : i64, scratch_operands = 0 : i64, tpu.core_type = #tpu.core_type<tc>, window_params = [{transform_indices = @transform_0, window_bounds = array<i64: 1, 1024>}, {transform_indices = @transform_1, window_bounds = array<i64: 1, 1024>}]} {
    %c0 = arith.constant 0 : index
    %c0_0 = arith.constant 0 : index
    %0 = vector.load %arg1[%c0, %c0_0] : memref<1x1024xf32, #tpu.memory_space<vmem>>, vector<1x1024xf32>
    %c0_1 = arith.constant 0 : index
    %c0_2 = arith.constant 0 : index
    %1 = vector.load %arg2[%c0_1, %c0_2] : memref<1x1024xf32, #tpu.memory_space<vmem>>, vector<1x1024xf32>
    tpu.vector_store %arg2[%c0_1, %c0_2], %0 {strides = array<i32>} : memref<1x1024xf32, #tpu.memory_space<vmem>>, vector<1x1024xf32>,
    return
  }
  func.func @transform_0(%arg0: i32) -> (i32, i32) {
    %c0_i32 = arith.constant 0 : i32
    %c0_i32_0 = arith.constant 0 : i32
    return %arg0, %c0_i32 : i32, i32
  }
  func.func @transform_1(%arg0: i32) -> (i32, i32) {
    %c0_i32 = arith.constant 0 : i32
    %c0_i32_0 = arith.constant 0 : i32
    return %arg0, %c0_i32 : i32, i32
  }
}

</mosaic_0001>

<llo_original>
// kernel: tpu_custom_call.1
$region0: #{tpu_custom_call.1}
  #allocation0 [shape = 'u32[]', space=smem, size = 0x4, offset = 0x4, fixed_abs, tag = 'smem constant byte address 0x4 - core index']
  #allocation1 [shape = 'u32[144,128]{1,0:T(1,128)}', space=vmem, size = 0x12000, scoped, tag = 'internal scratch']
  %s0 = inlined_call_operand.hbm [shape: f32[1,1024], index: 0, kind: input, shape index: {}]
  %s1 = inlined_call_operand.hbm [shape: f32[1,1024], index: 1, kind: output, shape index: {}]
  %s2 = sld [smem:[#allocation0]]
  $region18: #{tpu_custom_call.1} parent=0
    _
  %s4 = ssub.s32 1, %s2
  %s5 = scalar_select 0, %s4, %s2
  $region1: #{tpu_custom_call.1} parent=0
    #allocation2 [shape = 'u8[4096]{0}', space=vmem, size = 0x1000, scoped, tag = 'input window, operand 0, single buffered']
    #allocation3 [shape = 's32[1]{0}', space=sflag, size = 0x4, scoped, tag = 'scoped memory for tpu_custom_call.1']
    #allocation4 [shape = 's32[1]{0}', space=sflag, size = 0x4, scoped, tag = 'scoped memory for tpu_custom_call.1']
    #allocation5 [shape = 'u8[4096]{0}', space=vmem, size = 0x1000, scoped, tag = 'output window, operand 0, single buffered']
    %6 = vsyncpa [#allocation3], 0
    %7 = vsyncpa [#allocation4], 0
    // Predicated region
    $region2: #{tpu_custom_call.1} parent=1 // pred_check
      _
    $region3: #{tpu_custom_call.1} parent=1 // pred_check_branch
      %9 = sbr.rel (0) target = $region5
    $region4: #{tpu_custom_call.1} parent=1 // pred_region
      %s11 = ssub.s32 128, 128
      %12 = vsyncadd [#allocation3], %s11
      %s14 = sshll.u32 [#allocation2], 4
      %s15 = int_to_ptr.vmem [resolvable:$true] %s14
      %17 = dma.hbm_to_vmem [thread:$0]  %s0, 128, %s15, [#allocation3]
    $region5: #{tpu_custom_call.1} parent=1 // pred_fallthru
      _
    // Predicated region
    $region6: #{tpu_custom_call.1} parent=1 // pred_check
      _
    $region7: #{tpu_custom_call.1} parent=1 // pred_check_branch
      %19 = sbr.rel (0) target = $region9
    $region8: #{tpu_custom_call.1} parent=1 // pred_region
      %20 = dma.done [#allocation3], 128
    $region9: #{tpu_custom_call.1} parent=1 // pred_fallthru
      _
    %v21 = vld [vmem:[#allocation2] sm:$0xff]
    %22 = vst [vmem:[#allocation5] sm:$0xff] %v21
    // Predicated region
    $region10: #{tpu_custom_call.1} parent=1 // pred_check
      _
    $region11: #{tpu_custom_call.1} parent=1 // pred_check_branch
      %24 = sbr.rel (0) target = $region13
    $region12: #{tpu_custom_call.1} parent=1 // pred_region
      %s26 = ssub.s32 128, 128
      %27 = vsyncadd [#allocation4], %s26
      %s29 = sshll.u32 [#allocation5], 4
      %s30 = int_to_ptr.vmem [resolvable:$true] %s29
      %32 = dma.vmem_to_hbm [thread:$0]  %s30, 128, %s1, [#allocation4]
    $region13: #{tpu_custom_call.1} parent=1 // pred_fallthru
      _
    // Predicated region
    $region14: #{tpu_custom_call.1} parent=1 // pred_check
      _
    $region15: #{tpu_custom_call.1} parent=1 // pred_check_branch
      %34 = sbr.rel (0) target = $region17
    $region16: #{tpu_custom_call.1} parent=1 // pred_region
      %35 = dma.done [#allocation4], 128
    $region17: #{tpu_custom_call.1} parent=1 // pred_fallthru
      _
    %36 = vsyncpa [#allocation3], 1
    %37 = vsyncpa [#allocation4], 1

</llo_original>
